<compile_context>
chip_gen: v7x
topology: tpu7x:2x2x1
jax: 0.10.0
libtpu: 0.0.40
codegen_flags: <defaults>
</compile_context>

<pallas_src>
import itertools

import jax
import jax.numpy as jnp
from jax import lax
from jax.experimental import pallas as pl
from jax.experimental.pallas import tpu as pltpu

_COUT_PAD = 8   # Cout padded to one sublane group for the transposed store


def _segmenthead_kernel(g_ref, w1_ref, t2_ref, w2t_ref, b2_ref, o_ref):
    # conv1 with the 27 kernel offsets folded into one 216-deep contraction
    # (bf16 operands streamed from HBM, f32 MXU accumulation); bn2's scale is
    # pre-folded into the w1 columns.
    acc = jnp.dot(g_ref[...], w1_ref[...], preferred_element_type=jnp.float32)
    # bn2 shift + relu; bf16 so the second matmul is a single-pass MXU op.
    y = jnp.maximum(acc + t2_ref[...], 0.0).astype(jnp.bfloat16)       # (tn, Cmid)
    # conv2 (kernel_size=1, bias) computed TRANSPOSED: (Cout_pad=8, tn) so the
    # lane dim of the output store is tn (dense vst, 32 B/point writeback).
    out_t = lax.dot_general(
        w2t_ref[...], y,
        dimension_numbers=(((1,), (1,)), ((), ())),
        preferred_element_type=jnp.float32)                             # (8, tn)
    o_ref[...] = (out_t + b2_ref[...]).astype(o_ref.dtype)


def segmenthead_pallas(feats, nbr, exists, w1, scale1, shift1,
                       scale2, shift2, w2, b2, *, tn=1024):
    """segmenthead forward.

    feats: (N, Cin) f32; nbr/exists: (K, N) sparse-conv kernel map;
    w1: (K, Cin, Cmid) conv1 weight; scale*/shift*: folded inference BatchNorm;
    w2: (Cmid, Cout), b2: (1, Cout) conv2 (1x1) weight/bias.
    tn: N tile size (sweep 512-2048; footprint < 1 MB/tile even at 2048).
    """
    N, Cin = feats.shape
    K, _, Cmid = w1.shape
    Cout = w2.shape[-1]
    kc = K * Cin
    n_pad = pl.cdiv(N, tn) * tn

    # ---- wrapper-side prep (cheap O(N*Cin) per-point work, done once) ------
    # bn1 + relu once per point, cast to bf16 BEFORE the 27x-duplicating gather.
    h = jnp.maximum(feats * scale1 + shift1, 0.0).astype(jnp.bfloat16)
    # Zero sentinel row: invalid neighbors contribute exactly 0 to conv1.
    h_ext = jnp.concatenate([h, jnp.zeros((1, Cin), jnp.bfloat16)], axis=0)
    nbr_safe = jnp.where(exists, nbr, N).astype(jnp.int32)              # (K, N)
    # Pad the cheap index array (extra columns hit the sentinel) rather than
    # ever re-materializing the big gathered slab with jnp.pad.
    if n_pad != N:
        nbr_safe = jnp.pad(nbr_safe, ((0, 0), (0, n_pad - N)),
                           constant_values=N)
    g = jnp.take(h_ext, nbr_safe.T, axis=0).reshape(n_pad, kc)    # (n_pad, K*Cin)
    # TODO(synk): fuse this row gather into the kernel (scalar-prefetched nbr +
    # VMEM-resident h_ext slab) once arbitrary-row dynamic gather has a robust
    # Mosaic lowering; that would cut the remaining dominant HBM stream ~27x.

    # conv1 weight: fold K into the contraction rows and bn2's scale into the
    # columns, so the kernel epilogue is just add(shift2) + relu.
    w1f = (w1.reshape(kc, Cmid) * scale2).astype(jnp.bfloat16)
    shift2f = shift2.astype(jnp.float32)                                 # (1, Cmid)

    # conv2 weight/bias transposed and zero-padded to 8 output sublanes.
    w2t = jnp.zeros((_COUT_PAD, Cmid), jnp.float32).at[:Cout, :].set(w2.T)
    w2t = w2t.astype(jnp.bfloat16)
    b2t = jnp.zeros((_COUT_PAD, 1), jnp.float32).at[:Cout, :].set(b2.T)

    out_t = pl.pallas_call(
        _segmenthead_kernel,
        out_shape=jax.ShapeDtypeStruct((_COUT_PAD, n_pad), jnp.float32),
        grid_spec=pltpu.PrefetchScalarGridSpec(
            num_scalar_prefetch=0,
            grid=(n_pad // tn,),
            in_specs=[
                # gathered activation slab -- the only per-tile HBM stream.
                # If profiling shows exposed input DMA at large tn, add
                # pipeline_mode=pl.Buffered(3) to this spec (cheap sweep).
                pl.BlockSpec((tn, kc), lambda i: (i, 0)),
                pl.BlockSpec((kc, Cmid), lambda i: (0, 0)),        # conv1 W (bf16, bn2-scaled)
                pl.BlockSpec((1, Cmid), lambda i: (0, 0)),         # bn2 shift
                pl.BlockSpec((_COUT_PAD, Cmid), lambda i: (0, 0)),  # conv2 W^T (padded)
                pl.BlockSpec((_COUT_PAD, 1), lambda i: (0, 0)),     # conv2 b^T (padded)
            ],
            out_specs=pl.BlockSpec((_COUT_PAD, tn), lambda i: (0, i)),
        ),
        compiler_params=pltpu.CompilerParams(
            # TODO(synk): on v7x switch this axis to pltpu.CORE_PARALLEL (or a
            # core_map) after validating; plain "parallel" is the safe default
            # on single-TC v5e/v6e.
            dimension_semantics=("parallel",)),
    )(g, w1f, shift2f, w2t, b2t)

    return out_t[:Cout, :N].T                                            # (N, Cout)


def segmenthead_ref(feats, nbr, exists, w1, scale1, shift1,
                    scale2, shift2, w2, b2):
    """Pure-JAX reference of the module forward (f32 throughout)."""
    h = jnp.maximum(feats * scale1 + shift1, 0.0)
    g = h[nbr] * exists[..., None].astype(feats.dtype)          # (K, N, Cin)
    x = jnp.einsum('knc,kcm->nm', g, w1)
    y = jnp.maximum(x * scale2 + shift2, 0.0)
    return y @ w2 + b2


def build_kernel_map(coords, offsets):
    """Sparse-conv kernel map (glue, plain JAX; O(K*N^2) -- toy sizes only).

    coords: (N, 1+D) int32 (batch, x, y, z); offsets: (K, D) int32.
    Returns nbr (K, N) int32 and exists (K, N) bool.
    """
    xyz = coords[:, 1:]
    batch = coords[:, 0]
    tgt = xyz[None, :, :] + offsets[:, None, :]                       # (K, N, D)
    same_xyz = jnp.all(xyz[None, None, :, :] == tgt[:, :, None, :], axis=-1)
    same_batch = batch[:, None] == batch[None, :]                     # (N, N)
    match = same_xyz & same_batch[None, :, :]                         # (K, N, N)
    exists = jnp.any(match, axis=-1)                                  # (K, N)
    nbr = jnp.argmax(match, axis=-1).astype(jnp.int32)                # (K, N)
    return nbr, exists


if __name__ == "__main__":
    key = jax.random.PRNGKey(0)
    D = 3                        # Minkowski dimension=3 (sparse point cloud)
    B, N_per_batch = 2, 320
    N = B * N_per_batch
    Cin, Cmid, Cout = 8, 32, 5   # inplanes, interplanes, outplanes
    grid = 8                     # coordinate grid extent (8^3 = 512 cells)

    k_c, k_f, k_params = jax.random.split(key, 3)

    # Unique sparse coordinates per batch (sampled without replacement).
    coords_list = []
    for b in range(B):
        flat = jax.random.choice(jax.random.fold_in(k_c, b), grid ** 3,
                                 shape=(N_per_batch,), replace=False)
        xs = flat // (grid * grid)
        ys = (flat // grid) % grid
        zs = flat % grid
        bcol = jnp.full((N_per_batch,), b, dtype=jnp.int32)
        coords_list.append(
            jnp.stack([bcol, xs, ys, zs], axis=-1).astype(jnp.int32))
    coords = jnp.concatenate(coords_list, axis=0)                     # (N, 4)

    feats = jax.random.normal(k_f, (N, Cin), dtype=jnp.float32)       # (N, Cin)

    # kernel_size=3 in 3D -> 27 offsets in {-1,0,1}^3
    offsets = jnp.array(list(itertools.product([-1, 0, 1], repeat=D)),
                        dtype=jnp.int32)
    K = offsets.shape[0]
    nbr, exists = build_kernel_map(coords, offsets)

    # Deterministic synthetic parameters (shapes per module __init__).
    kp = jax.random.split(k_params, 8)
    w1 = jax.random.normal(kp[0], (K, Cin, Cmid), jnp.float32) / jnp.sqrt(K * Cin)
    w2 = jax.random.normal(kp[1], (Cmid, Cout), jnp.float32) / jnp.sqrt(Cmid)
    b2 = 0.1 * jax.random.normal(kp[2], (1, Cout), jnp.float32)
    eps = 1e-5
    gamma1, beta1 = jnp.ones((1, Cin)), jnp.zeros((1, Cin))
    rmean1 = 0.1 * jax.random.normal(kp[3], (1, Cin), jnp.float32)
    rvar1 = 1.0 + jnp.abs(jax.random.normal(kp[4], (1, Cin), jnp.float32))
    gamma2, beta2 = jnp.ones((1, Cmid)), jnp.zeros((1, Cmid))
    rmean2 = 0.1 * jax.random.normal(kp[5], (1, Cmid), jnp.float32)
    rvar2 = 1.0 + jnp.abs(jax.random.normal(kp[6], (1, Cmid), jnp.float32))

    # Fold inference-mode BatchNorm into scale/shift (parameter setup glue).
    scale1 = gamma1 / jnp.sqrt(rvar1 + eps)
    shift1 = beta1 - rmean1 * scale1
    scale2 = gamma2 / jnp.sqrt(rvar2 + eps)
    shift2 = beta2 - rmean2 * scale2

    # tn=256 here only to exercise multiple grid steps and the ragged-tail
    # (index-padding) path at toy N; production default is tn=1024 (sweep
    # 512-2048 per the HBM-roofline tile-size data).
    out = segmenthead_pallas(feats, nbr, exists, w1, scale1, shift1,
                             scale2, shift2, w2, b2, tn=256)
    jax.block_until_ready(out)
    assert out.shape == (N, Cout) and out.dtype == jnp.float32

    ref = segmenthead_ref(feats, nbr, exists, w1, scale1, shift1,
                          scale2, shift2, w2, b2)
    assert bool(jnp.allclose(out, ref, rtol=5e-2, atol=5e-2)), (
        "pallas kernel mismatch vs reference")
    print("KERNEL_OK")
</pallas_src>

<mosaic_0001>
module attributes {stable_mosaic.version = 11 : i64} {
  func.func @_segmenthead_kernel(%arg0: i32, %arg1: memref<256x216xbf16, #tpu.memory_space<vmem>>, %arg2: memref<216x32xbf16, #tpu.memory_space<vmem>>, %arg3: memref<1x32xf32, #tpu.memory_space<vmem>>, %arg4: memref<8x32xbf16, #tpu.memory_space<vmem>>, %arg5: memref<8x1xf32, #tpu.memory_space<vmem>>, %arg6: memref<8x256xf32, #tpu.memory_space<vmem>>) attributes {dimension_semantics = [#tpu.dimension_semantics<parallel>], iteration_bounds = array<i64: 3>, scalar_prefetch = 0 : i64, scratch_operands = 0 : i64, tpu.core_type = #tpu.core_type<tc>, window_params = [{transform_indices = @transform_0, window_bounds = array<i64: 256, 216>}, {pipeline_mode = #tpu.pipeline_mode<synchronous>, transform_indices = @transform_1, window_bounds = array<i64: 216, 32>}, {pipeline_mode = #tpu.pipeline_mode<synchronous>, transform_indices = @transform_2, window_bounds = array<i64: 1, 32>}, {pipeline_mode = #tpu.pipeline_mode<synchronous>, transform_indices = @transform_3, window_bounds = array<i64: 8, 32>}, {pipeline_mode = #tpu.pipeline_mode<synchronous>, transform_indices = @transform_4, window_bounds = array<i64: 8, 1>}, {transform_indices = @transform_5, window_bounds = array<i64: 8, 256>}]} {
    %c0 = arith.constant 0 : index
    %c0_0 = arith.constant 0 : index
    %0 = vector.load %arg1[%c0, %c0_0] : memref<256x216xbf16, #tpu.memory_space<vmem>>, vector<256x216xbf16>
    %c0_1 = arith.constant 0 : index
    %c0_2 = arith.constant 0 : index
    %1 = vector.load %arg2[%c0_1, %c0_2] : memref<216x32xbf16, #tpu.memory_space<vmem>>, vector<216x32xbf16>
    %cst = arith.constant dense<0.000000e+00> : vector<256x32xf32>
    %2 = tpu.matmul %0, %1, %cst {dimension_numbers = #tpu.dot_dimension_numbers<[1], [0], [0], [1], [0, 0, 1, 1], [], []>} : vector<256x216xbf16>, vector<216x32xbf16>, vector<256x32xf32> -> vector<256x32xf32>
    %c0_3 = arith.constant 0 : index
    %c0_4 = arith.constant 0 : index
    %3 = vector.load %arg3[%c0_3, %c0_4] : memref<1x32xf32, #tpu.memory_space<vmem>>, vector<1x32xf32>
    %4 = vector.broadcast %3 : vector<1x32xf32> to vector<256x32xf32>
    %5 = arith.addf %2, %4 : vector<256x32xf32>
    %cst_5 = arith.constant 0.000000e+00 : f32
    %6 = vector.broadcast %cst_5 : f32 to vector<256x32xf32>
    %7 = arith.maximumf %5, %6 : vector<256x32xf32>
    %8 = arith.truncf %7 : vector<256x32xf32> to vector<256x32xbf16>
    %c0_6 = arith.constant 0 : index
    %c0_7 = arith.constant 0 : index
    %9 = vector.load %arg4[%c0_6, %c0_7] : memref<8x32xbf16, #tpu.memory_space<vmem>>, vector<8x32xbf16>
    %cst_8 = arith.constant dense<0.000000e+00> : vector<8x256xf32>
    %10 = tpu.matmul %9, %8, %cst_8 {dimension_numbers = #tpu.dot_dimension_numbers<[1], [1], [0], [0], [0, 0, 1, 0], [], []>} : vector<8x32xbf16>, vector<256x32xbf16>, vector<8x256xf32> -> vector<8x256xf32>
    %c0_9 = arith.constant 0 : index
    %c0_10 = arith.constant 0 : index
    %11 = vector.load %arg5[%c0_9, %c0_10] : memref<8x1xf32, #tpu.memory_space<vmem>>, vector<8x1xf32>
    %12 = vector.broadcast %11 : vector<8x1xf32> to vector<8x256xf32>
    %13 = arith.addf %10, %12 : vector<8x256xf32>
    %c0_11 = arith.constant 0 : index
    %c0_12 = arith.constant 0 : index
    %14 = vector.load %arg6[%c0_11, %c0_12] : memref<8x256xf32, #tpu.memory_space<vmem>>, vector<8x256xf32>
    tpu.vector_store %arg6[%c0_11, %c0_12], %13 {strides = array<i32>} : memref<8x256xf32, #tpu.memory_space<vmem>>, vector<8x256xf32>,
    return
  }
  func.func @transform_0(%arg0: i32) -> (i32, i32) {
    %c0_i32 = arith.constant 0 : i32
    %c0_i32_0 = arith.constant 0 : i32
    return %arg0, %c0_i32 : i32, i32
  }
  func.func @transform_1(%arg0: i32) -> (i32, i32) {
    %c0_i32 = arith.constant 0 : i32
    %c0_i32_0 = arith.constant 0 : i32
    %c0_i32_1 = arith.constant 0 : i32
    return %c0_i32, %c0_i32_0 : i32, i32
  }
  func.func @transform_2(%arg0: i32) -> (i32, i32) {
    %c0_i32 = arith.constant 0 : i32
    %c0_i32_0 = arith.constant 0 : i32
    %c0_i32_1 = arith.constant 0 : i32
    return %c0_i32, %c0_i32_0 : i32, i32
  }
  func.func @transform_3(%arg0: i32) -> (i32, i32) {
    %c0_i32 = arith.constant 0 : i32
    %c0_i32_0 = arith.constant 0 : i32
    %c0_i32_1 = arith.constant 0 : i32
    return %c0_i32, %c0_i32_0 : i32, i32
  }
  func.func @transform_4(%arg0: i32) -> (i32, i32) {
    %c0_i32 = arith.constant 0 : i32
    %c0_i32_0 = arith.constant 0 : i32
    %c0_i32_1 = arith.constant 0 : i32
    return %c0_i32, %c0_i32_0 : i32, i32
  }
  func.func @transform_5(%arg0: i32) -> (i32, i32) {
    %c0_i32 = arith.constant 0 : i32
    %c0_i32_0 = arith.constant 0 : i32
    return %c0_i32, %arg0 : i32, i32
  }
}

</mosaic_0001>

<llo_original>
// kernel: tpu_custom_call.1
$region0: #{tpu_custom_call.1}
  #allocation0 [shape = 'u32[]', space=smem, size = 0x4, offset = 0x4, fixed_abs, tag = 'smem constant byte address 0x4 - core index']
  #allocation1 [shape = 'u32[144,128]{1,0:T(1,128)}', space=vmem, size = 0x12000, scoped, tag = 'internal scratch']
  %s0 = inlined_call_operand.vmem [shape: bf16[768,216], index: 0, kind: input, shape index: {}]
  %s1 = inlined_call_operand.vmem [shape: bf16[216,32], index: 1, kind: input, shape index: {}]
  %s2 = inlined_call_operand.vmem [shape: f32[1,32], index: 2, kind: input, shape index: {}]
  %s3 = inlined_call_operand.vmem [shape: bf16[8,32], index: 3, kind: input, shape index: {}]
  %s4 = inlined_call_operand.vmem [shape: f32[8,1], index: 4, kind: input, shape index: {}]
  %s5 = inlined_call_operand.hbm [shape: f32[8,768], index: 5, kind: output, shape index: {}]
  %s6 = sld [smem:[#allocation0]]
  $region53: #{tpu_custom_call.1} parent=0
    _
  %s8 = ssub.s32 1, %s6
  %s9 = scalar_select 0, %s8, %s6
  $region1: #{tpu_custom_call.1} parent=0
    #allocation2 [shape = 'u8[16384]{0}', space=vmem, size = 0x4000, scoped, tag = 'output window, operand 0']
    #allocation3 [shape = 's32[2]{0}', space=sflag, size = 0x8, scoped, tag = 'scoped memory for tpu_custom_call.1']
    %10 = vsyncpa [#allocation3], 0
    %s11 = scalar_lea.sflag [#allocation3], 1
    %12 = vsyncpa %s11, 0
    loop: start=0, step=1, limit=5
    $region2: #{tpu_custom_call.1} parent=1 // loop_pre_header
      _
    $region3: #{tpu_custom_call.1} parent=1 // loop_header
      %s14 = sphi 0, %s18
      %p15 = scmp.ge.s32.totalorder %s14, 5
      %s24 = sphi 0, %s26
      %s27 = sphi 0, %s24
      %s28 = sphi 0, %s27
      %s44 = sphi 0, %s28
      %s48 = sphi 0, %s48
      %s50 = sphi 0, %s48
      %s51 = sphi 0, %s50
      %s65 = sphi 0, %s51
      %s69 = sphi 0, %s69
      %s71 = sphi 0, %s69
      %s72 = sphi 0, %s71
      %s86 = sphi 0, %s72
      %s90 = sphi 0, %s90
      %s92 = sphi 0, %s90
      %s93 = sphi 0, %s92
      %s107 = sphi 0, %s93
      %s111 = sphi 0, %s111
      %s113 = sphi 0, %s111
      %s114 = sphi 0, %s113
      %s128 = sphi 0, %s114
      %s134 = sphi 0, %s136
      %s137 = sphi 0, %s134
      %s138 = sphi 0, %s137
      %s154 = sphi 0, %s138
    $region4: #{tpu_custom_call.1} parent=1 // loop_header_branch
      %17 = sbr.rel (%p15) target = $region8
    $region5: #{tpu_custom_call.1} parent=1 // loop_body
      %s19 = ssub.s32 %s14, 1
      %s20 = ssub.s32 %s14, 2
      %s21 = sadd.s32 %s14, 1
      %s22 = ssub.s32 %s14, %s21
      %p23 = scmp.eq.s32.totalorder %s22, 0
      %s25 = sadd.s32 %s24, 1
      %s26 = scalar_select %p23, %s24, %s25
      %p29 = pneg %p23
      %p30 = scmp.eq.s32.totalorder %s14, 2
      %p31 = por %p29, %p30
      %p32 = scmp.ne.s32.totalorder %s24, %s27
      %p33 = scmp.eq.s32.totalorder %s14, 0
      %p34 = por %p32, %p33
      %p35 = scmp.ne.s32.totalorder %s24, %s27
      %p36 = scmp.eq.s32.totalorder %s19, 2
      %p37 = por %p35, %p36
      %p38 = scmp.ne.s32.totalorder %s27, %s28
      %p39 = scmp.eq.s32.totalorder %s19, 0
      %p40 = por %p38, %p39
      %p41 = scmp.ne.s32.totalorder %s27, %s28
      %p42 = scmp.eq.s32.totalorder %s20, 2
      %p43 = por %p41, %p42
      %p45 = scmp.ne.s32.totalorder %s28, %s44
      %p46 = scmp.eq.s32.totalorder %s20, 0
      %p47 = por %p45, %p46
      %s49 = sadd.s32 %s48, 1
      %p52 = scmp.eq.s32.totalorder %s14, 2
      %p53 = scmp.ne.s32.totalorder %s48, %s50
      %p54 = scmp.eq.s32.totalorder %s14, 0
      %p55 = por %p53, %p54
      %p56 = scmp.ne.s32.totalorder %s48, %s50
      %p57 = scmp.eq.s32.totalorder %s19, 2
      %p58 = por %p56, %p57
      %p59 = scmp.ne.s32.totalorder %s50, %s51
      %p60 = scmp.eq.s32.totalorder %s19, 0
      %p61 = por %p59, %p60
      %p62 = scmp.ne.s32.totalorder %s50, %s51
      %p63 = scmp.eq.s32.totalorder %s20, 2
      %p64 = por %p62, %p63
      %p66 = scmp.ne.s32.totalorder %s51, %s65
      %p67 = scmp.eq.s32.totalorder %s20, 0
      %p68 = por %p66, %p67
      %s70 = sadd.s32 %s69, 1
      %p73 = scmp.eq.s32.totalorder %s14, 2
      %p74 = scmp.ne.s32.totalorder %s69, %s71
      %p75 = scmp.eq.s32.totalorder %s14, 0
      %p76 = por %p74, %p75
      %p77 = scmp.ne.s32.totalorder %s69, %s71
      %p78 = scmp.eq.s32.totalorder %s19, 2
      %p79 = por %p77, %p78
      %p80 = scmp.ne.s32.totalorder %s71, %s72
      %p81 = scmp.eq.s32.totalorder %s19, 0
      %p82 = por %p80, %p81
      %p83 = scmp.ne.s32.totalorder %s71, %s72
      %p84 = scmp.eq.s32.totalorder %s20, 2
      %p85 = por %p83, %p84
      %p87 = scmp.ne.s32.totalorder %s72, %s86
      %p88 = scmp.eq.s32.totalorder %s20, 0
      %p89 = por %p87, %p88
      %s91 = sadd.s32 %s90, 1
      %p94 = scmp.eq.s32.totalorder %s14, 2
      %p95 = scmp.ne.s32.totalorder %s90, %s92
      %p96 = scmp.eq.s32.totalorder %s14, 0
      %p97 = por %p95, %p96
      %p98 = scmp.ne.s32.totalorder %s90, %s92
      %p99 = scmp.eq.s32.totalorder %s19, 2
      %p100 = por %p98, %p99
      %p101 = scmp.ne.s32.totalorder %s92, %s93
      %p102 = scmp.eq.s32.totalorder %s19, 0
      %p103 = por %p101, %p102
      %p104 = scmp.ne.s32.totalorder %s92, %s93
      %p105 = scmp.eq.s32.totalorder %s20, 2
      %p106 = por %p104, %p105
      %p108 = scmp.ne.s32.totalorder %s93, %s107
      %p109 = scmp.eq.s32.totalorder %s20, 0
      %p110 = por %p108, %p109
      %s112 = sadd.s32 %s111, 1
      %p115 = scmp.eq.s32.totalorder %s14, 2
      %p116 = scmp.ne.s32.totalorder %s111, %s113
      %p117 = scmp.eq.s32.totalorder %s14, 0
      %p118 = por %p116, %p117
      %p119 = scmp.ne.s32.totalorder %s111, %s113
      %p120 = scmp.eq.s32.totalorder %s19, 2
      %p121 = por %p119, %p120
      %p122 = scmp.ne.s32.totalorder %s113, %s114
      %p123 = scmp.eq.s32.totalorder %s19, 0
      %p124 = por %p122, %p123
      %p125 = scmp.ne.s32.totalorder %s113, %s114
      %p126 = scmp.eq.s32.totalorder %s20, 2
      %p127 = por %p125, %p126
      %p129 = scmp.ne.s32.totalorder %s114, %s128
      %p130 = scmp.eq.s32.totalorder %s20, 0
      %p131 = por %p129, %p130
      %s132 = ssub.s32 %s14, %s21
      %p133 = scmp.eq.s32.totalorder %s132, 0
      %s135 = sadd.s32 %s134, 1
      %s136 = scalar_select %p133, %s134, %s135
      %p139 = pneg %p133
      %p140 = scmp.eq.s32.totalorder %s14, 2
      %p141 = por %p139, %p140
      %p142 = scmp.ne.s32.totalorder %s134, %s137
      %p143 = scmp.eq.s32.totalorder %s14, 0
      %p144 = por %p142, %p143
      %p145 = scmp.ne.s32.totalorder %s134, %s137
      %p146 = scmp.eq.s32.totalorder %s19, 2
      %p147 = por %p145, %p146
      %p148 = scmp.ne.s32.totalorder %s137, %s138
      %p149 = scmp.eq.s32.totalorder %s19, 0
      %p150 = por %p148, %p149
      %p151 = scmp.ne.s32.totalorder %s137, %s138
      %p152 = scmp.eq.s32.totalorder %s20, 2
      %p153 = por %p151, %p152
      %p155 = scmp.ne.s32.totalorder %s138, %s154
      %p156 = scmp.eq.s32.totalorder %s20, 0
      %p157 = por %p155, %p156
      %p158 = scmp.le.s32.totalorder 1, %s14
      %p159 = scmp.lt.s32.totalorder %s14, 4
      %p160 = pnand %p158, %p159
      %p161 = pneg %p160
      // Predicated region
      $region9: #{tpu_custom_call.1} parent=5 // pred_check
        _
      $region10: #{tpu_custom_call.1} parent=5 // pred_check_branch
        %163 = sbr.rel (%p160) target = $region12
      $region11: #{tpu_custom_call.1} parent=5 // pred_region
        %s164 = ssub.s32 %s14, 1
        // Predicated region
        $region13: #{tpu_custom_call.1} parent=11 // pred_check
          %p165 = pneg %p61
        $region14: #{tpu_custom_call.1} parent=11 // pred_check_branch
          %167 = sbr.rel (%p165) target = $region16
        $region15: #{tpu_custom_call.1} parent=11 // pred_region
          _
        $region16: #{tpu_custom_call.1} parent=11 // pred_fallthru
          _
        // Predicated region
        $region17: #{tpu_custom_call.1} parent=11 // pred_check
          %p168 = pneg %p82
        $region18: #{tpu_custom_call.1} parent=11 // pred_check_branch
          %170 = sbr.rel (%p168) target = $region20
        $region19: #{tpu_custom_call.1} parent=11 // pred_region
          _
        $region20: #{tpu_custom_call.1} parent=11 // pred_fallthru
          _
        // Predicated region
        $region21: #{tpu_custom_call.1} parent=11 // pred_check
          %p171 = pneg %p103
        $region22: #{tpu_custom_call.1} parent=11 // pred_check_branch
          %173 = sbr.rel (%p171) target = $region24
        $region23: #{tpu_custom_call.1} parent=11 // pred_region
          _
        $region24: #{tpu_custom_call.1} parent=11 // pred_fallthru
          _
        // Predicated region
        $region25: #{tpu_custom_call.1} parent=11 // pred_check
          %p174 = pneg %p124
        $region26: #{tpu_custom_call.1} parent=11 // pred_check_branch
          %176 = sbr.rel (%p174) target = $region28
        $region27: #{tpu_custom_call.1} parent=11 // pred_region
          _
        $region28: #{tpu_custom_call.1} parent=11 // pred_fallthru
          _
      $region12: #{tpu_custom_call.1} parent=5 // pred_fallthru
        _
      %p177 = scmp.lt.s32.totalorder %s14, 3
      // Predicated region
      $region29: #{tpu_custom_call.1} parent=5 // pred_check
        %p178 = pneg %p177
      $region30: #{tpu_custom_call.1} parent=5 // pred_check_branch
        %180 = sbr.rel (%p178) target = $region32
      $region31: #{tpu_custom_call.1} parent=5 // pred_region
        // Predicated region
        $region33: #{tpu_custom_call.1} parent=31 // pred_check
          %p181 = pneg %p34
        $region34: #{tpu_custom_call.1} parent=31 // pred_check_branch
          %183 = sbr.rel (%p181) target = $region36
        $region35: #{tpu_custom_call.1} parent=31 // pred_region
          %s184 = smul.u32 32, %s14
          %p185 = scmp.lt.s32.totalorder %s184, 95
          %s186 = scalar_select %p185, %s184, 95
          %s187 = smul.addr %s186, 2
          %s188 = smul.addr %s187, 4
          %s189 = scalar_lea.vmem %s0, %s188
          %s190 = smul.u32 32, %s14
        $region36: #{tpu_custom_call.1} parent=31 // pred_fallthru
          _
      $region32: #{tpu_custom_call.1} parent=5 // pred_fallthru
        _
      %p191 = scmp.le.s32.totalorder 1, %s14
      %p192 = scmp.lt.s32.totalorder %s14, 4
      %p193 = pnand %p191, %p192
      %p194 = pneg %p193
      // Predicated region
      $region37: #{tpu_custom_call.1} parent=5 // pred_check
        _
      $region38: #{tpu_custom_call.1} parent=5 // pred_check_branch
        %196 = sbr.rel (%p193) target = $region40
      $region39: #{tpu_custom_call.1} parent=5 // pred_region
        %s197 = ssub.s32 %s14, 1
        %s198 = smul.u32 32, %s19
        %p199 = scmp.lt.s32.totalorder %s198, 95
        %s200 = scalar_select %p199, %s198, 95
        %s201 = smul.addr %s200, 2
        %s202 = smul.addr %s201, 4
        %s203 = scalar_lea.vmem %s0, %s202
        %p204 = pneg %p40
        %p205 = pneg %p37
        %p206 = pneg %p61
        %p207 = pneg %p58
        %p208 = pneg %p82
        %p209 = pneg %p79
        %p210 = pneg %p103
        %p211 = pneg %p100
        %p212 = pneg %p124
        %p213 = pneg %p121
        %p214 = pneg %p150
        %p215 = pneg %p147
        %s216 = sand.u32 %s137, 1
        %s217 = scalar_lea.sflag [#allocation3], %s216
        %s218 = sand.u32 %s137, 1
        %s219 = smul.addr %s218, 16
        %s220 = scalar_lea.vmem [#allocation2], %s219
        %s221 = smul.u32 32, %s19
        %p222 = scmp.lt.s32.totalorder %s221, 95
        %s223 = scalar_select %p222, %s221, 95
        %s224 = smul.addr %s223, 2
        %s225 = smul.addr %s224, 4
        %s226 = scalar_lea.vmem %s0, %s225
        %s227 = smul.u32 32, %s19
        %s228 = smul.u32 2, %s19
        %v230 = vld [vmem:[%s226] sm:$0xff]
        %v231 = vld [vmem:[%s226 + $0x8] sm:$0xff]
        %v232 = vld [vmem:[%s226 + $0x10] sm:$0xff]
        %v233 = vld [vmem:[%s226 + $0x18] sm:$0xff]
        %v234 = vld [vmem:[%s226 + $0x20] sm:$0xff]
        %v235 = vld [vmem:[%s226 + $0x28] sm:$0xff]
        %v236 = vld [vmem:[%s226 + $0x30] sm:$0xff]
        %v237 = vld [vmem:[%s226 + $0x38] sm:$0xff]
        %v238 = vld [vmem:[%s226 + $0x40] sm:$0xff]
        %v239 = vld [vmem:[%s226 + $0x48] sm:$0xff]
        %v240 = vld [vmem:[%s226 + $0x50] sm:$0xff]
        %v241 = vld [vmem:[%s226 + $0x58] sm:$0xff]
        %v242 = vld [vmem:[%s226 + $0x60] sm:$0xff]
        %v243 = vld [vmem:[%s226 + $0x68] sm:$0xff]
        %v244 = vld [vmem:[%s226 + $0x70] sm:$0xff]
        %v245 = vld [vmem:[%s226 + $0x78] sm:$0xff]
        %v246 = vld [vmem:[%s226 + $0x80] sm:$0xff]
        %v247 = vld [vmem:[%s226 + $0x88] sm:$0xff]
        %v248 = vld [vmem:[%s226 + $0x90] sm:$0xff]
        %v249 = vld [vmem:[%s226 + $0x98] sm:$0xff]
        %v250 = vld [vmem:[%s226 + $0xa0] sm:$0xff]
        %v251 = vld [vmem:[%s226 + $0xa8] sm:$0xff]
        %v252 = vld [vmem:[%s226 + $0xb0] sm:$0xff]
        %v253 = vld [vmem:[%s226 + $0xb8] sm:$0xff]
        %v254 = vld [vmem:[%s226 + $0xc0] sm:$0xff]
        %v255 = vld [vmem:[%s226 + $0xc8] sm:$0xff]
        %v256 = vld [vmem:[%s226 + $0xd0] sm:$0xff]
        %v257 = vld [vmem:[%s226 + $0xd8] sm:$0xff]
        %v258 = vld [vmem:[%s226 + $0xe0] sm:$0xff]
        %v259 = vld [vmem:[%s226 + $0xe8] sm:$0xff]
        %v260 = vld [vmem:[%s226 + $0xf0] sm:$0xff]
        %v261 = vld [vmem:[%s226 + $0xf8] sm:$0xff]
        %v262 = vld [vmem:[%s1] sm:$0xf]
        %v263 = vld [vmem:[%s1 + $0x4] sm:$0xf]
        %v264 = vld [vmem:[%s1 + $0x8] sm:$0xf]
        %v265 = vld [vmem:[%s1 + $0xc] sm:$0xf]
        %v266 = vld [vmem:[%s1 + $0x10] sm:$0xf]
        %v267 = vld [vmem:[%s1 + $0x14] sm:$0xf]
        %v268 = vld [vmem:[%s1 + $0x18] sm:$0xf]
        %v269 = vld [vmem:[%s1 + $0x1c] sm:$0xf]
        %v270 = vld [vmem:[%s1 + $0x20] sm:$0xf]
        %v271 = vld [vmem:[%s1 + $0x24] sm:$0xf]
        %v272 = vld [vmem:[%s1 + $0x28] sm:$0xf]
        %v273 = vld [vmem:[%s1 + $0x2c] sm:$0xf]
        %v274 = vld [vmem:[%s1 + $0x30] sm:$0xf]
        %v275 = vld [vmem:[%s1 + $0x34] sm:$0xf]
        %v276 = vld [vmem:[%s1 + $0x38] sm:$0xf]
        %v277 = vld [vmem:[%s1 + $0x3c] sm:$0xf]
        %v278 = vld [vmem:[%s1 + $0x40] sm:$0xf]
        %v279 = vld [vmem:[%s1 + $0x44] sm:$0xf]
        %v280 = vld [vmem:[%s1 + $0x48] sm:$0xf]
        %v281 = vld [vmem:[%s1 + $0x4c] sm:$0xf]
        %v282 = vld [vmem:[%s1 + $0x50] sm:$0xf]
        %v283 = vld [vmem:[%s1 + $0x54] sm:$0xf]
        %v284 = vld [vmem:[%s1 + $0x58] sm:$0xf]
        %v285 = vld [vmem:[%s1 + $0x5c] sm:$0xf]
        %v286 = vld [vmem:[%s1 + $0x60] sm:$0xf]
        %v287 = vld [vmem:[%s1 + $0x64] sm:$0xf]
        %v288 = vld [vmem:[%s1 + $0x68] sm:$0xf]
        %v289 = vld [vmem:[%s2] sm:$0x1]
        %v291 = vlaneseq
        %v292 = vshrl.u32 %v291, 7
        %v293 = vsub.s32 0, %v292
        %v294 = vrot.slane %v289, %v293
        %v328 = vunpack.c.l.b16 %v230
        %v329 = vunpack.c.h.b16 %v230
        %v330 = vunpack.c.l.b16 %v231
        %v331 = vunpack.c.h.b16 %v231
        %v332 = vunpack.c.l.b16 %v232
        %v333 = vunpack.c.h.b16 %v232
        %v334 = vunpack.c.l.b16 %v233
        %v335 = vunpack.c.h.b16 %v233
        %v336 = vunpack.c.l.b16 %v234
        %v337 = vunpack.c.h.b16 %v234
        %v338 = vunpack.c.l.b16 %v235
        %v339 = vunpack.c.h.b16 %v235
        %v340 = vunpack.c.l.b16 %v236
        %v341 = vunpack.c.h.b16 %v236
        %v342 = vunpack.c.l.b16 %v237
        %v343 = vunpack.c.h.b16 %v237
        %v344 = vunpack.c.l.b16 %v238
        %v345 = vunpack.c.h.b16 %v238
        %v346 = vunpack.c.l.b16 %v239
        %v347 = vunpack.c.h.b16 %v239
        %v348 = vunpack.c.l.b16 %v240
        %v349 = vunpack.c.h.b16 %v240
        %v350 = vunpack.c.l.b16 %v241
        %v351 = vunpack.c.h.b16 %v241
        %v352 = vunpack.c.l.b16 %v242
        %v353 = vunpack.c.h.b16 %v242
        %v354 = vunpack.c.l.b16 %v243
        %v355 = vunpack.c.h.b16 %v243
        %v356 = vunpack.c.l.b16 %v244
        %v357 = vunpack.c.h.b16 %v244
        %v358 = vunpack.c.l.b16 %v245
        %v359 = vunpack.c.h.b16 %v245
        %v360 = vunpack.c.l.b16 %v246
        %v361 = vunpack.c.h.b16 %v246
        %v362 = vunpack.c.l.b16 %v247
        %v363 = vunpack.c.h.b16 %v247
        %v364 = vunpack.c.l.b16 %v248
        %v365 = vunpack.c.h.b16 %v248
        %v366 = vunpack.c.l.b16 %v249
        %v367 = vunpack.c.h.b16 %v249
        %v368 = vunpack.c.l.b16 %v250
        %v369 = vunpack.c.h.b16 %v250
        %v370 = vunpack.c.l.b16 %v251
        %v371 = vunpack.c.h.b16 %v251
        %v372 = vunpack.c.l.b16 %v252
        %v373 = vunpack.c.h.b16 %v252
        %v374 = vunpack.c.l.b16 %v253
        %v375 = vunpack.c.h.b16 %v253
        %v376 = vunpack.c.l.b16 %v254
        %v377 = vunpack.c.h.b16 %v254
        %v378 = vunpack.c.l.b16 %v255
        %v379 = vunpack.c.h.b16 %v255
        %v380 = vunpack.c.l.b16 %v256
        %v381 = vunpack.c.h.b16 %v256
        %v382 = vunpack.c.l.b16 %v257
        %v383 = vunpack.c.h.b16 %v257
        %v384 = vunpack.c.l.b16 %v258
        %v385 = vunpack.c.h.b16 %v258
        %v386 = vunpack.c.l.b16 %v259
        %v387 = vunpack.c.h.b16 %v259
        %v388 = vunpack.c.l.b16 %v260
        %v389 = vunpack.c.h.b16 %v260
        %v390 = vunpack.c.l.b16 %v261
        %v391 = vunpack.c.h.b16 %v261
        %v392 = vpack.c.b16 %v330, %v328
        %v393 = vpack.c.b16 %v331, %v329
        %v394 = vpack.c.b16 %v334, %v332
        %v395 = vpack.c.b16 %v335, %v333
        %v396 = vpack.c.b16 %v338, %v336
        %v397 = vpack.c.b16 %v339, %v337
        %v398 = vpack.c.b16 %v342, %v340
        %v399 = vpack.c.b16 %v343, %v341
        %v400 = vpack.c.b16 %v346, %v344
        %v401 = vpack.c.b16 %v347, %v345
        %v402 = vpack.c.b16 %v350, %v348
        %v403 = vpack.c.b16 %v351, %v349
        %v404 = vpack.c.b16 %v354, %v352
        %v405 = vpack.c.b16 %v355, %v353
        %v406 = vpack.c.b16 %v358, %v356
        %v407 = vpack.c.b16 %v359, %v357
        %v408 = vpack.c.b16 %v362, %v360
        %v409 = vpack.c.b16 %v363, %v361
        %v410 = vpack.c.b16 %v366, %v364
        %v411 = vpack.c.b16 %v367, %v365
        %v412 = vpack.c.b16 %v370, %v368
        %v413 = vpack.c.b16 %v371, %v369
        %v414 = vpack.c.b16 %v374, %v372
        %v415 = vpack.c.b16 %v375, %v373
        %v416 = vpack.c.b16 %v378, %v376
        %v417 = vpack.c.b16 %v379, %v377
        %v418 = vpack.c.b16 %v382, %v380
        %v419 = vpack.c.b16 %v383, %v381
        %v420 = vpack.c.b16 %v386, %v384
        %v421 = vpack.c.b16 %v387, %v385
        %v422 = vpack.c.b16 %v390, %v388
        %v423 = vpack.c.b16 %v391, %v389
        %v467 = vunpack.c.l.b16 %v262
        %v468 = vunpack.c.l.b16 %v263
        %v469 = vunpack.c.l.b16 %v264
        %v470 = vunpack.c.l.b16 %v265
        %v471 = vunpack.c.l.b16 %v266
        %v472 = vunpack.c.l.b16 %v267
        %v473 = vunpack.c.l.b16 %v268
        %v474 = vunpack.c.l.b16 %v269
        %v475 = vunpack.c.l.b16 %v270
        %v476 = vunpack.c.l.b16 %v271
        %v477 = vunpack.c.l.b16 %v272
        %v478 = vunpack.c.l.b16 %v273
        %v479 = vunpack.c.l.b16 %v274
        %v480 = vunpack.c.l.b16 %v275
        %v481 = vunpack.c.l.b16 %v276
        %v482 = vunpack.c.l.b16 %v277
        %v483 = vunpack.c.l.b16 %v278
        %v484 = vunpack.c.l.b16 %v279
        %v485 = vunpack.c.l.b16 %v280
        %v486 = vunpack.c.l.b16 %v281
        %v487 = vunpack.c.l.b16 %v282
        %v488 = vunpack.c.l.b16 %v283
        %v489 = vunpack.c.l.b16 %v284
        %v490 = vunpack.c.l.b16 %v285
        %v491 = vunpack.c.l.b16 %v286
        %v492 = vunpack.c.l.b16 %v287
        %v493 = vunpack.c.l.b16 %v288
        %v494 = vpack.c.b16 %v468, %v467
        %v495 = vpack.c.b16 %v470, %v469
        %v496 = vpack.c.b16 %v472, %v471
        %v497 = vpack.c.b16 %v474, %v473
        %v498 = vpack.c.b16 %v476, %v475
        %v499 = vpack.c.b16 %v478, %v477
        %v500 = vpack.c.b16 %v480, %v479
        %v501 = vpack.c.b16 %v482, %v481
        %v502 = vpack.c.b16 %v484, %v483
        %v503 = vpack.c.b16 %v486, %v485
        %v504 = vpack.c.b16 %v488, %v487
        %v505 = vpack.c.b16 %v490, %v489
        %v506 = vpack.c.b16 %v492, %v491
        %v507 = vpack.c.b16 %v493, %v493
        %vm521 = vcmask 719872
        %v523 = vsel %vm521, %v393, 0
        %v526 = vsel %vm521, %v395, 0
        %v529 = vsel %vm521, %v397, 0
        %v532 = vsel %vm521, %v399, 0
        %v535 = vsel %vm521, %v401, 0
        %v538 = vsel %vm521, %v403, 0
        %v541 = vsel %vm521, %v405, 0
        %v544 = vsel %vm521, %v407, 0
        %v547 = vsel %vm521, %v409, 0
        %v550 = vsel %vm521, %v411, 0
        %v553 = vsel %vm521, %v413, 0
        %v556 = vsel %vm521, %v415, 0
        %v559 = vsel %vm521, %v417, 0
        %v562 = vsel %vm521, %v419, 0
        %v565 = vsel %vm521, %v421, 0
        %v568 = vsel %vm521, %v423, 0
        %vm570 = vcmask 1043456
        %v572 = vsel %vm570, %v507, 0
        %574 = vmatprep.subr.bf16.mxu0 0
        %575 = vmatpush1.bf16.msra.mxu0 %v494
        %576 = vmatprep.subr.bf16.mxu0 0
        %577 = vmatpush1.bf16.msra.mxu0 %v495
        %578 = vmatprep.subr.bf16.mxu0 0
        %579 = vmatpush1.bf16.msra.mxu0 %v496
        %580 = vmatprep.subr.bf16.mxu0 0
        %581 = vmatpush1.bf16.msra.mxu0 %v497
        %582 = vmatprep.subr.bf16.mxu0 0
        %583 = vmatpush1.bf16.msra.mxu0 %v498
        %584 = vmatprep.subr.bf16.mxu0 0
        %585 = vmatpush1.bf16.msra.mxu0 %v499
        %586 = vmatprep.subr.bf16.mxu0 0
        %587 = vmatpush1.bf16.msra.mxu0 %v500
        %588 = vmatprep.subr.bf16.mxu0 0
        %589 = vmatpush1.bf16.msra.mxu0 %v501
        %590 = vmatprep.subr.bf16.mxu0 0
        %591 = vmatpush1.bf16.msra.mxu0 %v502
        %592 = vmatprep.subr.bf16.mxu0 0
        %593 = vmatpush1.bf16.msra.mxu0 %v503
        %594 = vmatprep.subr.bf16.mxu0 0
        %595 = vmatpush1.bf16.msra.mxu0 %v504
        %596 = vmatprep.subr.bf16.mxu0 0
        %597 = vmatpush1.bf16.msra.mxu0 %v505
        %598 = vmatprep.subr.bf16.mxu0 0
        %599 = vmatpush1.bf16.msra.mxu0 %v506
        %600 = vmatprep.subr.bf16.mxu0 0
        %601 = vmatpush1.bf16.msra.mxu0 %v572
        %602 = vmatprep.subr.bf16.mxu0 0
        %603 = vmatpush1.bf16.msra.mxu0 0
        %604 = vmatprep.subr.bf16.mxu0 0
        %605 = vmatpush1.bf16.msra.mxu0 0
        %606 = vmatprep.mubr.bf16.mxu0 %v523
        %607 = vmatmul.mubr.bf16.gmra.mrb[0].mxu0 %v392
        %v608 = vpop.f32.mrb[0].mxu0
        %v609 = vadd.f32 %v294, %v608
        %v610 = vpop.f32.mrb[0].mxu0
        %v611 = vpop.f32.mrb[0].mxu0
        %v612 = vadd.f32 %v294, %v611
        %v613 = vpop.f32.mrb[0].mxu0
        %614 = vmatprep.mubr.bf16.mxu0 %v526
        %615 = vmatmul.mubr.bf16.gmra.mrb[0].mxu0 %v394
        %v616 = vpop.f32.mrb[0].mxu0
        %v617 = vadd.f32 %v294, %v616
        %v618 = vpop.f32.mrb[0].mxu0
        %v619 = vpop.f32.mrb[0].mxu0
        %v620 = vadd.f32 %v294, %v619
        %v621 = vpop.f32.mrb[0].mxu0
        %622 = vmatprep.mubr.bf16.mxu0 %v529
        %623 = vmatmul.mubr.bf16.gmra.mrb[0].mxu0 %v396
        %v624 = vpop.f32.mrb[0].mxu0
        %v625 = vadd.f32 %v294, %v624
        %v626 = vpop.f32.mrb[0].mxu0
        %v627 = vpop.f32.mrb[0].mxu0
        %v628 = vadd.f32 %v294, %v627
        %v629 = vpop.f32.mrb[0].mxu0
        %630 = vmatprep.mubr.bf16.mxu0 %v532
        %631 = vmatmul.mubr.bf16.gmra.mrb[0].mxu0 %v398
        %v632 = vpop.f32.mrb[0].mxu0
        %v633 = vadd.f32 %v294, %v632
        %v634 = vpop.f32.mrb[0].mxu0
        %v635 = vpop.f32.mrb[0].mxu0
        %v636 = vadd.f32 %v294, %v635
        %v637 = vpop.f32.mrb[0].mxu0
        %638 = vmatprep.mubr.bf16.mxu0 %v535
        %639 = vmatmul.mubr.bf16.gmra.mrb[0].mxu0 %v400
        %v640 = vpop.f32.mrb[0].mxu0
        %v641 = vadd.f32 %v294, %v640
        %v642 = vpop.f32.mrb[0].mxu0
        %v643 = vpop.f32.mrb[0].mxu0
        %v644 = vadd.f32 %v294, %v643
        %v645 = vpop.f32.mrb[0].mxu0
        %646 = vmatprep.mubr.bf16.mxu0 %v538
        %647 = vmatmul.mubr.bf16.gmra.mrb[0].mxu0 %v402
        %v648 = vpop.f32.mrb[0].mxu0
        %v649 = vadd.f32 %v294, %v648
        %v650 = vpop.f32.mrb[0].mxu0
        %v651 = vpop.f32.mrb[0].mxu0
        %v652 = vadd.f32 %v294, %v651
        %v653 = vpop.f32.mrb[0].mxu0
        %654 = vmatprep.mubr.bf16.mxu0 %v541
        %655 = vmatmul.mubr.bf16.gmra.mrb[0].mxu0 %v404
        %v656 = vpop.f32.mrb[0].mxu0
        %v657 = vadd.f32 %v294, %v656
        %v658 = vpop.f32.mrb[0].mxu0
        %v659 = vpop.f32.mrb[0].mxu0
        %v660 = vadd.f32 %v294, %v659
        %v661 = vpop.f32.mrb[0].mxu0
        %662 = vmatprep.mubr.bf16.mxu0 %v544
        %663 = vmatmul.mubr.bf16.gmra.mrb[0].mxu0 %v406
        %v664 = vpop.f32.mrb[0].mxu0
        %v665 = vadd.f32 %v294, %v664
        %v666 = vpop.f32.mrb[0].mxu0
        %v667 = vpop.f32.mrb[0].mxu0
        %v668 = vadd.f32 %v294, %v667
        %v669 = vpop.f32.mrb[0].mxu0
        %670 = vmatprep.mubr.bf16.mxu0 %v547
        %671 = vmatmul.mubr.bf16.gmra.mrb[0].mxu0 %v408
        %v672 = vpop.f32.mrb[0].mxu0
        %v673 = vadd.f32 %v294, %v672
        %v674 = vpop.f32.mrb[0].mxu0
        %v675 = vpop.f32.mrb[0].mxu0
        %v676 = vadd.f32 %v294, %v675
        %v677 = vpop.f32.mrb[0].mxu0
        %678 = vmatprep.mubr.bf16.mxu0 %v550
        %679 = vmatmul.mubr.bf16.gmra.mrb[0].mxu0 %v410
        %v680 = vpop.f32.mrb[0].mxu0
        %v681 = vadd.f32 %v294, %v680
        %v682 = vpop.f32.mrb[0].mxu0
        %v683 = vpop.f32.mrb[0].mxu0
        %v684 = vadd.f32 %v294, %v683
        %v685 = vpop.f32.mrb[0].mxu0
        %686 = vmatprep.mubr.bf16.mxu0 %v553
        %687 = vmatmul.mubr.bf16.gmra.mrb[0].mxu0 %v412
        %v688 = vpop.f32.mrb[0].mxu0
        %v689 = vadd.f32 %v294, %v688
        %v690 = vpop.f32.mrb[0].mxu0
        %v691 = vpop.f32.mrb[0].mxu0
        %v692 = vadd.f32 %v294, %v691
        %v693 = vpop.f32.mrb[0].mxu0
        %694 = vmatprep.mubr.bf16.mxu0 %v556
        %695 = vmatmul.mubr.bf16.gmra.mrb[0].mxu0 %v414
        %v696 = vpop.f32.mrb[0].mxu0
        %v697 = vadd.f32 %v294, %v696
        %v698 = vpop.f32.mrb[0].mxu0
        %v699 = vpop.f32.mrb[0].mxu0
        %v700 = vadd.f32 %v294, %v699
        %v701 = vpop.f32.mrb[0].mxu0
        %702 = vmatprep.mubr.bf16.mxu0 %v559
        %703 = vmatmul.mubr.bf16.gmra.mrb[0].mxu0 %v416
        %v704 = vpop.f32.mrb[0].mxu0
        %v705 = vadd.f32 %v294, %v704
        %v706 = vpop.f32.mrb[0].mxu0
        %v707 = vpop.f32.mrb[0].mxu0
        %v708 = vadd.f32 %v294, %v707
        %v709 = vpop.f32.mrb[0].mxu0
        %710 = vmatprep.mubr.bf16.mxu0 %v562
        %711 = vmatmul.mubr.bf16.gmra.mrb[0].mxu0 %v418
        %v712 = vpop.f32.mrb[0].mxu0
        %v713 = vadd.f32 %v294, %v712
        %v714 = vpop.f32.mrb[0].mxu0
        %v715 = vpop.f32.mrb[0].mxu0
        %v716 = vadd.f32 %v294, %v715
        %v717 = vpop.f32.mrb[0].mxu0
        %718 = vmatprep.mubr.bf16.mxu0 %v565
        %719 = vmatmul.mubr.bf16.gmra.mrb[0].mxu0 %v420
        %v720 = vpop.f32.mrb[0].mxu0
        %v721 = vadd.f32 %v294, %v720
        %v722 = vpop.f32.mrb[0].mxu0
        %v723 = vpop.f32.mrb[0].mxu0
        %v724 = vadd.f32 %v294, %v723
        %v725 = vpop.f32.mrb[0].mxu0
        %726 = vmatprep.mubr.bf16.mxu0 %v568
        %727 = vmatmul.mubr.bf16.gmra.mrb[0].mxu0 %v422
        %v728 = vpop.f32.mrb[0].mxu0
        %v729 = vadd.f32 %v294, %v728
        %v730 = vpop.f32.mrb[0].mxu0
        %v731 = vpop.f32.mrb[0].mxu0
        %v732 = vadd.f32 %v294, %v731
        %v733 = vpop.f32.mrb[0].mxu0
        %734 = vdwg.mxu0
        %v735 = vmax.f32 %v609, 0.0
        %v736 = vmax.f32 %v612, 0.0
        %v737 = vmax.f32 %v617, 0.0
        %v738 = vmax.f32 %v620, 0.0
        %v739 = vmax.f32 %v625, 0.0
        %v740 = vmax.f32 %v628, 0.0
        %v741 = vmax.f32 %v633, 0.0
        %v742 = vmax.f32 %v636, 0.0
        %v743 = vmax.f32 %v641, 0.0
        %v744 = vmax.f32 %v644, 0.0
        %v745 = vmax.f32 %v649, 0.0
        %v746 = vmax.f32 %v652, 0.0
        %v747 = vmax.f32 %v657, 0.0
        %v748 = vmax.f32 %v660, 0.0
        %v749 = vmax.f32 %v665, 0.0
        %v750 = vmax.f32 %v668, 0.0
        %v751 = vmax.f32 %v673, 0.0
        %v752 = vmax.f32 %v676, 0.0
        %v753 = vmax.f32 %v681, 0.0
        %v754 = vmax.f32 %v684, 0.0
        %v755 = vmax.f32 %v689, 0.0
        %v756 = vmax.f32 %v692, 0.0
        %v757 = vmax.f32 %v697, 0.0
        %v758 = vmax.f32 %v700, 0.0
        %v759 = vmax.f32 %v705, 0.0
        %v760 = vmax.f32 %v708, 0.0
        %v761 = vmax.f32 %v713, 0.0
        %v762 = vmax.f32 %v716, 0.0
        %v763 = vmax.f32 %v721, 0.0
        %v764 = vmax.f32 %v724, 0.0
        %v765 = vmax.f32 %v729, 0.0
        %v766 = vmax.f32 %v732, 0.0
        %v767 = vpack.c.bf16 %v736, %v735
        %v768 = vpack.c.bf16 %v738, %v737
        %v769 = vpack.c.bf16 %v740, %v739
        %v770 = vpack.c.bf16 %v742, %v741
        %v771 = vpack.c.bf16 %v744, %v743
        %v772 = vpack.c.bf16 %v746, %v745
        %v773 = vpack.c.bf16 %v748, %v747
        %v774 = vpack.c.bf16 %v750, %v749
        %v775 = vpack.c.bf16 %v752, %v751
        %v776 = vpack.c.bf16 %v754, %v753
        %v777 = vpack.c.bf16 %v756, %v755
        %v778 = vpack.c.bf16 %v758, %v757
        %v779 = vpack.c.bf16 %v760, %v759
        %v780 = vpack.c.bf16 %v762, %v761
        %v781 = vpack.c.bf16 %v764, %v763
        %v782 = vpack.c.bf16 %v766, %v765
        %v783 = vld [vmem:[%s3] sm:$0xf]
        %v784 = vld [vmem:[%s4] sm:$0xff]
        %786 = vset.pattern.permute.xlu0 0
        %787 = vperm.xlu0 %786, %v784
        %v788 = vpop.permute.xlu0 %787
        %vm790 = vcmask 261120
        %v792 = vsel %vm790, %v783, 0
        %v795 = vsel %vm790, %v767, 0
        %v798 = vsel %vm790, %v768, 0
        %v801 = vsel %vm790, %v769, 0
        %v804 = vsel %vm790, %v770, 0
        %v807 = vsel %vm790, %v771, 0
        %v810 = vsel %vm790, %v772, 0
        %v813 = vsel %vm790, %v773, 0
        %v816 = vsel %vm790, %v774, 0
        %v819 = vsel %vm790, %v775, 0
        %v822 = vsel %vm790, %v776, 0
        %v825 = vsel %vm790, %v777, 0
        %v828 = vsel %vm790, %v778, 0
        %v831 = vsel %vm790, %v779, 0
        %v834 = vsel %vm790, %v780, 0
        %v837 = vsel %vm790, %v781, 0
        %v840 = vsel %vm790, %v782, 0
        %842 = vmatprep.subr.bf16.mxu0 0
        %843 = vmatpush1.bf16.xpose.msra.mxu0 %v795
        %844 = vmatprep.subr.bf16.mxu0 0
        %845 = vmatpush1.bf16.xpose.msra.mxu0 %v798
        %846 = vmatprep.subr.bf16.mxu0 0
        %847 = vmatpush1.bf16.xpose.msra.mxu0 %v801
        %848 = vmatprep.subr.bf16.mxu0 0
        %849 = vmatpush1.bf16.xpose.msra.mxu0 %v804
        %850 = vmatprep.subr.bf16.mxu0 0
        %851 = vmatpush1.bf16.xpose.msra.mxu0 %v807
        %852 = vmatprep.subr.bf16.mxu0 0
        %853 = vmatpush1.bf16.xpose.msra.mxu0 %v810
        %854 = vmatprep.subr.bf16.mxu0 0
        %855 = vmatpush1.bf16.xpose.msra.mxu0 %v813
        %856 = vmatprep.subr.bf16.mxu0 0
        %857 = vmatpush1.bf16.xpose.msra.mxu0 %v816
        %858 = vmatprep.subr.bf16.mxu0 0
        %859 = vmatpush1.bf16.xpose.msra.mxu0 %v819
        %860 = vmatprep.subr.bf16.mxu0 0
        %861 = vmatpush1.bf16.xpose.msra.mxu0 %v822
        %862 = vmatprep.subr.bf16.mxu0 0
        %863 = vmatpush1.bf16.xpose.msra.mxu0 %v825
        %864 = vmatprep.subr.bf16.mxu0 0
        %865 = vmatpush1.bf16.xpose.msra.mxu0 %v828
        %866 = vmatprep.subr.bf16.mxu0 0
        %867 = vmatpush1.bf16.xpose.msra.mxu0 %v831
        %868 = vmatprep.subr.bf16.mxu0 0
        %869 = vmatpush1.bf16.xpose.msra.mxu0 %v834
        %870 = vmatprep.subr.bf16.mxu0 0
        %871 = vmatpush1.bf16.xpose.msra.mxu0 %v837
        %872 = vmatprep.subr.bf16.mxu0 0
        %873 = vmatpush1.bf16.xpose.msra.mxu0 %v840
        %874 = vmatprep.mubr.bf16.mxu0 0
        %875 = vmatmul.mubr.bf16.gmra.mrb[0].mxu0 %v792
        %v876 = vpop.f32.mrb[0].mxu0
        %v877 = vadd.f32 %v788, %v876
        %v878 = vpop.f32.mrb[0].mxu0
        %v879 = vadd.f32 %v788, %v878
        %v880 = vpop.f32.mrb[0].mxu0
        %v881 = vpop.f32.mrb[0].mxu0
        %882 = vdwg.mxu0
        %883 = vst [vmem:[%s220] sm:$0xff] %v877
        %884 = vst [vmem:[%s220 + $0x8] sm:$0xff] %v879
        %s885 = sand.u32 %s137, 1
        %s886 = scalar_lea.sflag [#allocation3], %s885
        %s887 = sand.u32 %s137, 1
        %s888 = smul.addr %s887, 16
        %s889 = scalar_lea.vmem [#allocation2], %s888
        // Predicated region
        $region41: #{tpu_custom_call.1} parent=39 // pred_check
          %p890 = pneg %p147
        $region42: #{tpu_custom_call.1} parent=39 // pred_check_branch
          %892 = sbr.rel (%p890) target = $region44
        $region43: #{tpu_custom_call.1} parent=39 // pred_region
          %s893 = smul.u32 2, %s19
          %s895 = ssub.s32 256, 256
          %896 = vsyncadd %s886, %s895
          %s897 = smul.addr %s893, 128
          %s898 = scalar_lea.hbm %s5, %s897
          %s900 = sshll.u32 %s889, 4
          %s901 = int_to_ptr.vmem [resolvable:$true] %s900
          %903 = dma.vmem_to_hbm [thread:$0]  %s901, 256, %s898, %s886
        $region44: #{tpu_custom_call.1} parent=39 // pred_fallthru
          _
      $region40: #{tpu_custom_call.1} parent=5 // pred_fallthru
        _
      %p904 = scmp.le.s32.totalorder 2, %s14
      // Predicated region
      $region45: #{tpu_custom_call.1} parent=5 // pred_check
        %p905 = pneg %p904
      $region46: #{tpu_custom_call.1} parent=5 // pred_check_branch
        %907 = sbr.rel (%p905) target = $region48
      $region47: #{tpu_custom_call.1} parent=5 // pred_region
        %s908 = ssub.s32 %s14, 2
        // Predicated region
        $region49: #{tpu_custom_call.1} parent=47 // pred_check
          %p909 = pneg %p153
        $region50: #{tpu_custom_call.1} parent=47 // pred_check_branch
          %911 = sbr.rel (%p909) target = $region52
        $region51: #{tpu_custom_call.1} parent=47 // pred_region
          %s912 = sand.u32 %s138, 1
          %s913 = scalar_lea.sflag [#allocation3], %s912
          %s914 = sand.u32 %s138, 1
          %s915 = smul.addr %s914, 16
          %s916 = scalar_lea.vmem [#allocation2], %s915
          %917 = dma.done %s913, 256
        $region52: #{tpu_custom_call.1} parent=47 // pred_fallthru
          _
      $region48: #{tpu_custom_call.1} parent=5 // pred_fallthru
        _
    $region6: #{tpu_custom_call.1} parent=1 // loop_footer
      %s18 = sadd.s32 1, %s14
    $region7: #{tpu_custom_call.1} parent=1 // loop_footer_branch
      %13 = sbr.rel target = $region3
    $region8: #{tpu_custom_call.1} parent=1 // loop_exit
      _
    %918 = vsyncpa [#allocation3], 1
    %s919 = scalar_lea.sflag [#allocation3], 1
    %920 = vsyncpa %s919, 1

</llo_original>
